<compile_context>
chip_gen: v5e
topology: v5e:2x2
jax: 0.10.0
libtpu: 0.0.40
codegen_flags: <defaults>
</compile_context>

<pallas_src>
import functools

import jax
import jax.numpy as jnp
from jax import lax
from jax.experimental import pallas as pl
from jax.experimental.pallas import tpu as pltpu


# ---------------------------------------------------------------------------
# VMEM accounting helpers (generation-aware)
# ---------------------------------------------------------------------------

def _round_up(x, m):
    return (x + m - 1) // m * m


def _buf_bytes(shape, itemsize):
    """Conservative VMEM footprint of one buffer, including (8,128) tile padding."""
    shape = tuple(int(d) for d in shape)
    if len(shape) == 0:
        return 4
    if len(shape) == 1:
        return _round_up(shape[0], 128) * itemsize
    lead = 1
    for d in shape[:-2]:
        lead *= d
    return lead * _round_up(shape[-2], 8) * _round_up(shape[-1], 128) * itemsize


def _vmem_capacity_bytes():
    """Per-TensorCore VMEM capacity (128 MiB v5e/v6e, 64 MiB v7x)."""
    try:
        return int(pltpu.get_tpu_info().vmem_capacity_bytes)
    except Exception:
        return 64 << 20  # conservative fallback (v7x per-TC)


def _fused_vmem_need(C, H, W, Ho, Wo, itemsize):
    HW, HoWo = H * W, Ho * Wo
    x_blk = _buf_bytes((1, C, HW), itemsize)
    o_blk = _buf_bytes((1, C, HoWo), itemsize)
    mask = _buf_bytes((HW, HoWo), 4)
    temps = (
        3 * _buf_bytes((C, HW), 4)        # x32, exp(x32), xe
        + 2 * _buf_bytes((1, HW), 4)      # e_x (+ transient)
        + 2 * _buf_bytes((C, HoWo), 4)    # num, scaled result before cast
        + 2 * _buf_bytes((1, HoWo), 4)    # den, 1/den
    )
    # double-buffered pipeline blocks + mask (budget 2 copies) + temps + headroom
    return 2 * (x_blk + o_blk) + 2 * mask + temps + (2 << 20)


def _pass1_vmem_need(ct, hw_blk, itemsize):
    x_blk = _buf_bytes((1, ct, hw_blk), itemsize)
    ex_blk = _buf_bytes((1, 1, hw_blk), 4)
    temps = 2 * _buf_bytes((ct, hw_blk), 4) + 2 * _buf_bytes((1, hw_blk), 4)
    return 2 * (x_blk + ex_blk) + temps + (2 << 20)


def _pass2_vmem_need(ct, H, W, Ho, Wo, itemsize):
    x_blk = _buf_bytes((1, ct, H, W), itemsize)
    ex_blk = _buf_bytes((1, 1, H, W), 4)
    o_blk = _buf_bytes((1, ct, Ho, Wo), itemsize)
    temps = (
        2 * _buf_bytes((ct, H, W), 4)       # cast + xe
        + _buf_bytes((ct, H, Wo), 4)        # W-contraction result
        + _buf_bytes((ct, Ho, H), 4)        # broadcasted ph
        + 2 * _buf_bytes((ct, Ho, Wo), 4)   # num + scaled result
        + _buf_bytes((Ho, H), 4) + _buf_bytes((W, Wo), 4)
        + _buf_bytes((Ho, W), 4) + 2 * _buf_bytes((Ho, Wo), 4)
    )
    return 2 * (x_blk + ex_blk + o_blk) + temps + (2 << 20)


def _clamp_limit(need, cap):
    return int(min(max(need, 32 << 20), int(cap * 0.9)))


# ---------------------------------------------------------------------------
# Pooling masks
# ---------------------------------------------------------------------------

def _combined_pool_mask(H, W, Ho, Wo, k, s, p):
    """(H*W, Ho*Wo) 0/1 window-membership matrix (zero-padding baked in).

    Built wrapper-side with plain XLA; passed to the kernel with a constant
    index_map so it is fetched into VMEM once and reused across grid steps.
    """
    def mask_1d(n_in, n_out):
        i = jnp.arange(n_in, dtype=jnp.int32)[:, None]
        o = jnp.arange(n_out, dtype=jnp.int32)[None, :]
        start = o * s - p
        return ((i >= start) & (i < start + k)).astype(jnp.float32)

    mh = mask_1d(H, Ho)  # (H, Ho)
    mw = mask_1d(W, Wo)  # (W, Wo)
    # Kronecker product: row index h*W + w, col index oh*Wo + ow.
    return (mh[:, None, :, None] * mw[None, :, None, :]).reshape(H * W, Ho * Wo)


def _pool_mask(out_size, in_size, k, s, p, *, transposed=False):
    """In-kernel 1-D 0/1 pooling matrix (used by the separable fallback kernel)."""
    if transposed:
        shape, in_ax, out_ax = (in_size, out_size), 0, 1
    else:
        shape, in_ax, out_ax = (out_size, in_size), 1, 0
    i = lax.broadcasted_iota(jnp.int32, shape, in_ax)
    o = lax.broadcasted_iota(jnp.int32, shape, out_ax)
    start = o * s - p
    return ((i >= start) & (i < start + k)).astype(jnp.float32)


# ---------------------------------------------------------------------------
# Fused single-pass kernel (primary path)
# ---------------------------------------------------------------------------

def _softpool_fused_kernel(x_ref, mask_ref, o_ref):
    # x_ref:    (1, C, H*W)    lane-dense input view (x read from HBM once)
    # mask_ref: (H*W, Ho*Wo)   combined pooling matrix (resident, constant index)
    # o_ref:    (1, C, Ho*Wo)  lane-dense output view
    x32 = x_ref[0].astype(jnp.float32)                        # (C, HW), cast fused
    e_x = jnp.sum(jnp.exp(x32), axis=0, keepdims=True)        # (1, HW) channel sum
    xe = x32 * e_x                                            # (C, HW)
    mask = mask_ref[...]

    # Single lane-dense MXU matmul covering both spatial contractions.
    num = jnp.dot(xe, mask, preferred_element_type=jnp.float32)    # (C, HoWo)
    # Denominator: one tiny M=1 matmul per batch (cheaper than a (C+1,HW) concat).
    den = jnp.dot(e_x, mask, preferred_element_type=jnp.float32)   # (1, HoWo)

    inv_den = pl.reciprocal(den)                              # exact (approx=False)
    o_ref[0] = (num * inv_den).astype(o_ref.dtype)


def _softpool2d_fused(x, k, s, p, Ho, Wo, vmem_limit):
    N, C, H, W = x.shape
    HW, HoWo = H * W, Ho * Wo
    mask = _combined_pool_mask(H, W, Ho, Wo, k, s, p)

    out = pl.pallas_call(
        _softpool_fused_kernel,
        out_shape=jax.ShapeDtypeStruct((N, C, HoWo), x.dtype),
        grid_spec=pltpu.PrefetchScalarGridSpec(
            num_scalar_prefetch=0,
            grid=(N,),
            in_specs=[
                pl.BlockSpec((1, C, HW), lambda n: (n, 0, 0)),
                pl.BlockSpec((HW, HoWo), lambda n: (0, 0)),
            ],
            out_specs=pl.BlockSpec((1, C, HoWo), lambda n: (n, 0, 0)),
        ),
        compiler_params=pltpu.CompilerParams(
            dimension_semantics=("parallel",),   # batch axis shards across TCs
            vmem_limit_bytes=vmem_limit,
        ),
    )(x.reshape(N, C, HW), mask)
    return out.reshape(N, C, Ho, Wo)


# ---------------------------------------------------------------------------
# Two-pass channel-tiled fallback (large slabs / large spatial)
# ---------------------------------------------------------------------------

def _exp_sum_kernel(x_ref, ex_ref):
    # x_ref:  (1, Ct, HWblk) lane-dense; ex_ref: (1, 1, HWblk) f32 accumulator,
    # resident across the channel-tile axis (innermost, "arbitrary").
    @pl.when(pl.program_id(2) == 0)
    def _():
        ex_ref[...] = jnp.zeros_like(ex_ref)

    ex_ref[...] += jnp.sum(jnp.exp(x_ref[...].astype(jnp.float32)),
                           axis=1, keepdims=True)


def _pool_kernel_separable(x_ref, ex_ref, o_ref, *, k, s, p):
    # x_ref: (1, Ct, H, W); ex_ref: (1, 1, H, W) f32; o_ref: (1, Ct, Ho, Wo)
    _, Ct, H, W = x_ref.shape
    Ho, Wo = o_ref.shape[2], o_ref.shape[3]

    ph = _pool_mask(Ho, H, k, s, p)                     # (Ho, H)
    pwt = _pool_mask(Wo, W, k, s, p, transposed=True)   # (W, Wo)

    e_x = ex_ref[0, 0]                                  # (H, W) f32
    xe = x_ref[0].astype(jnp.float32) * e_x             # (Ct, H, W)

    # W contraction as one 2D matmul: (Ct*H, W) @ (W, Wo).
    a = jnp.dot(xe.reshape(Ct * H, W), pwt, preferred_element_type=jnp.float32)
    a = a.reshape(Ct, H, Wo)

    # H contraction, batched over channels.
    ph_b = jnp.broadcast_to(ph, (Ct, Ho, H))
    num = lax.dot_general(
        ph_b, a,
        dimension_numbers=(((2,), (1,)), ((0,), (0,))),
        preferred_element_type=jnp.float32,
    )                                                   # (Ct, Ho, Wo)

    den = jnp.dot(
        jnp.dot(ph, e_x, preferred_element_type=jnp.float32),
        pwt, preferred_element_type=jnp.float32,
    )                                                   # (Ho, Wo)
    inv_den = pl.reciprocal(den)

    o_ref[0] = (num * inv_den[None, :, :]).astype(o_ref.dtype)


def _pick_c_tile(C, H, W, Ho, Wo, itemsize, cap):
    """Largest channel tile (divisor of C; multiple of 8 unless it is C itself)
    whose two-pass working set fits the generation-aware budget."""
    budget = int(cap * 0.7)
    cands = sorted({C, *[t for t in range(8, C, 8) if C % t == 0]}, reverse=True)
    for t in cands:
        need = max(_pass1_vmem_need(t, H * W, itemsize),
                   _pass2_vmem_need(t, H, W, Ho, Wo, itemsize))
        if need <= budget:
            return t
    # TODO(synk): pad C to a multiple of 8 when it has no small divisor and even
    # the smallest candidate exceeds the budget; for now take the smallest one.
    return cands[-1]


def _softpool2d_two_pass(x, k, s, p, Ho, Wo, cap):
    N, C, H, W = x.shape
    HW = H * W
    itemsize = jnp.dtype(x.dtype).itemsize

    ct = _pick_c_tile(C, H, W, Ho, Wo, itemsize, cap)
    n_ct = C // ct

    # Split the lane-dense H*W axis so both v7x TensorCores get work when the
    # batch axis alone cannot feed them (the channel axis is an accumulation).
    n_hw = 2 if (N < 2 and HW >= 2048 and HW % 256 == 0) else 1
    hw_blk = HW // n_hw

    # ---- Pass 1: e_x = sum over channels of exp(x), lane-dense over H*W ----
    x_flat = x.reshape(N, C, HW)
    p1_limit = _clamp_limit(_pass1_vmem_need(ct, hw_blk, itemsize), cap)
    ex = pl.pallas_call(
        _exp_sum_kernel,
        out_shape=jax.ShapeDtypeStruct((N, 1, HW), jnp.float32),
        grid_spec=pltpu.PrefetchScalarGridSpec(
            num_scalar_prefetch=0,
            grid=(N, n_hw, n_ct),   # reduction (channel-tile) axis innermost
            in_specs=[pl.BlockSpec((1, ct, hw_blk), lambda n, h, c: (n, c, h))],
            out_specs=pl.BlockSpec((1, 1, hw_blk), lambda n, h, c: (n, 0, h)),
        ),
        compiler_params=pltpu.CompilerParams(
            dimension_semantics=("parallel", "parallel", "arbitrary"),
            vmem_limit_bytes=p1_limit,
        ),
    )(x_flat)
    ex = ex.reshape(N, 1, H, W)

    # ---- Pass 2: pooled numerator / denominator per (batch, channel-tile) ----
    # Channel-tile axis is kept innermost: the ex BlockSpec index depends only
    # on n, so consecutive c steps reuse the resident ex block (no re-DMA).
    kernel = functools.partial(_pool_kernel_separable, k=k, s=s, p=p)
    p2_limit = _clamp_limit(_pass2_vmem_need(ct, H, W, Ho, Wo, itemsize), cap)
    return pl.pallas_call(
        kernel,
        out_shape=jax.ShapeDtypeStruct((N, C, Ho, Wo), x.dtype),
        grid_spec=pltpu.PrefetchScalarGridSpec(
            num_scalar_prefetch=0,
            grid=(N, n_ct),
            in_specs=[
                pl.BlockSpec((1, ct, H, W), lambda n, c: (n, c, 0, 0)),
                pl.BlockSpec((1, 1, H, W), lambda n, c: (n, 0, 0, 0)),
            ],
            out_specs=pl.BlockSpec((1, ct, Ho, Wo), lambda n, c: (n, c, 0, 0)),
        ),
        compiler_params=pltpu.CompilerParams(
            dimension_semantics=("parallel", "parallel"),
            vmem_limit_bytes=p2_limit,
        ),
    )(x, ex)


# ---------------------------------------------------------------------------
# Public entry point
# ---------------------------------------------------------------------------

def softpool2d(x, kernel_size, stride=None, padding=None):
    """SoftPool2D forward. x: (N, C, H, W)."""
    k = int(kernel_size)
    s = k if stride is None else int(stride)
    p = k if padding is None else int(padding)

    N, C, H, W = x.shape
    Ho = (H + 2 * p - k) // s + 1
    Wo = (W + 2 * p - k) // s + 1
    itemsize = jnp.dtype(x.dtype).itemsize
    cap = _vmem_capacity_bytes()

    fused_need = _fused_vmem_need(C, H, W, Ho, Wo, itemsize)
    if fused_need <= int(cap * 0.75):
        # Fused single-pass: x read once, e_x never leaves VMEM.
        return _softpool2d_fused(x, k, s, p, Ho, Wo,
                                 vmem_limit=_clamp_limit(fused_need, cap))
    # Fallback for slabs / masks that do not fit a single VMEM block.
    return _softpool2d_two_pass(x, k, s, p, Ho, Wo, cap)


# ---------------------------------------------------------------------------
# Reference + self-test
# ---------------------------------------------------------------------------

def _softpool2d_reference(x, k, s, p):
    """Pure-JAX reference mirroring the PyTorch code (count_include_pad=True)."""
    e_x = jnp.sum(jnp.exp(x), axis=1, keepdims=True)

    def avg_pool(y):
        yp = jnp.pad(y, ((0, 0), (0, 0), (p, p), (p, p)))
        sums = lax.reduce_window(yp, 0.0, lax.add, (1, 1, k, k), (1, 1, s, s), "VALID")
        return sums / float(k * k)

    sk = float(2 * k)
    return (avg_pool(x * e_x) * sk) / (avg_pool(e_x) * sk)


if __name__ == "__main__":
    key = jax.random.PRNGKey(0)
    # SoftPool2D(kernel_size=3, stride=2, padding=1)
    kernel_size, stride, padding = 3, 2, 1
    x = jax.random.normal(key, (2, 4, 16, 16), dtype=jnp.float32)

    out = softpool2d(x, kernel_size, stride, padding)
    out = jax.block_until_ready(out)

    ref = _softpool2d_reference(x, kernel_size, stride, padding)
    assert out.shape == ref.shape, (out.shape, ref.shape)
    assert jnp.allclose(out, ref, atol=1e-4, rtol=1e-4), "mismatch vs reference"

    print("KERNEL_OK")
</pallas_src>

<mosaic_0001>
module attributes {stable_mosaic.version = 11 : i64} {
  func.func @_softpool_fused_kernel(%arg0: i32, %arg1: memref<1x4x256xf32, #tpu.memory_space<vmem>>, %arg2: memref<256x64xf32, #tpu.memory_space<vmem>>, %arg3: memref<1x4x64xf32, #tpu.memory_space<vmem>>) attributes {dimension_semantics = [#tpu.dimension_semantics<parallel>], iteration_bounds = array<i64: 2>, scalar_prefetch = 0 : i64, scratch_operands = 0 : i64, tpu.core_type = #tpu.core_type<tc>, window_params = [{transform_indices = @transform_0, window_bounds = array<i64: 1, 4, 256>}, {pipeline_mode = #tpu.pipeline_mode<synchronous>, transform_indices = @transform_1, window_bounds = array<i64: 256, 64>}, {transform_indices = @transform_2, window_bounds = array<i64: 1, 4, 64>}]} {
    %c0 = arith.constant 0 : index
    %c0_0 = arith.constant 0 : index
    %c0_1 = arith.constant 0 : index
    %0 = vector.load %arg1[%c0, %c0_0, %c0_1] : memref<1x4x256xf32, #tpu.memory_space<vmem>>, vector<1x4x256xf32>
    %1 = vector.shape_cast %0 : vector<1x4x256xf32> to vector<4x256xf32>
    %2 = math.exp %1 : vector<4x256xf32>
    %cst = arith.constant dense<0.000000e+00> : vector<256xf32>
    %3 = vector.multi_reduction <add>, %2, %cst [0] : vector<4x256xf32> to vector<256xf32>
    %4 = vector.shape_cast %3 : vector<256xf32> to vector<1x256xf32>
    %5 = vector.broadcast %4 : vector<1x256xf32> to vector<4x256xf32>
    %6 = arith.mulf %1, %5 : vector<4x256xf32>
    %c0_2 = arith.constant 0 : index
    %c0_3 = arith.constant 0 : index
    %7 = vector.load %arg2[%c0_2, %c0_3] : memref<256x64xf32, #tpu.memory_space<vmem>>, vector<256x64xf32>
    %cst_4 = arith.constant dense<0.000000e+00> : vector<4x64xf32>
    %8 = tpu.matmul %6, %7, %cst_4 {dimension_numbers = #tpu.dot_dimension_numbers<[1], [0], [0], [1], [0, 0, 1, 1], [], []>} : vector<4x256xf32>, vector<256x64xf32>, vector<4x64xf32> -> vector<4x64xf32>
    %cst_5 = arith.constant dense<0.000000e+00> : vector<1x64xf32>
    %9 = tpu.matmul %4, %7, %cst_5 {dimension_numbers = #tpu.dot_dimension_numbers<[1], [0], [0], [1], [0, 0, 1, 1], [], []>} : vector<1x256xf32>, vector<256x64xf32>, vector<1x64xf32> -> vector<1x64xf32>
    %10 = tpu.reciprocal %9 : vector<1x64xf32> -> vector<1x64xf32>
    %11 = vector.broadcast %10 : vector<1x64xf32> to vector<4x64xf32>
    %12 = arith.mulf %8, %11 : vector<4x64xf32>
    %c0_6 = arith.constant 0 : index
    %c0_7 = arith.constant 0 : index
    %c0_8 = arith.constant 0 : index
    %13 = vector.load %arg3[%c0_6, %c0_7, %c0_8] : memref<1x4x64xf32, #tpu.memory_space<vmem>>, vector<1x4x64xf32>
    %14 = vector.shape_cast %13 : vector<1x4x64xf32> to vector<4x64xf32>
    %15 = vector.shape_cast %12 : vector<4x64xf32> to vector<1x4x64xf32>
    tpu.vector_store %arg3[%c0_6, %c0_7, %c0_8], %15 {strides = array<i32>} : memref<1x4x64xf32, #tpu.memory_space<vmem>>, vector<1x4x64xf32>,
    return
  }
  func.func @transform_0(%arg0: i32) -> (i32, i32, i32) {
    %c0_i32 = arith.constant 0 : i32
    %c0_i32_0 = arith.constant 0 : i32
    %c0_i32_1 = arith.constant 0 : i32
    return %arg0, %c0_i32, %c0_i32_0 : i32, i32, i32
  }
  func.func @transform_1(%arg0: i32) -> (i32, i32) {
    %c0_i32 = arith.constant 0 : i32
    %c0_i32_0 = arith.constant 0 : i32
    %c0_i32_1 = arith.constant 0 : i32
    return %c0_i32, %c0_i32_0 : i32, i32
  }
  func.func @transform_2(%arg0: i32) -> (i32, i32, i32) {
    %c0_i32 = arith.constant 0 : i32
    %c0_i32_0 = arith.constant 0 : i32
    %c0_i32_1 = arith.constant 0 : i32
    return %arg0, %c0_i32, %c0_i32_0 : i32, i32, i32
  }
}

</mosaic_0001>

<llo_original>
// kernel: tpu_custom_call.1
$region0: #{tpu_custom_call.1}
  #allocation0 [shape = 'u32[]', space=smem, size = 0x4, offset = 0x4, fixed_abs, tag = 'smem constant byte address 0x4 - core index']
  #allocation1 [shape = 'u32[72,128]{1,0:T(1,128)}', space=vmem, size = 0x9000, scoped, tag = 'internal scratch']
  %s0 = inlined_call_operand.vmem [shape: f32[2,4,256], index: 0, kind: input, shape index: {}]
  %s1 = inlined_call_operand.vmem [shape: f32[256,64], index: 1, kind: input, shape index: {}]
  %s2 = inlined_call_operand.hbm [shape: f32[2,4,64], index: 2, kind: output, shape index: {}]
  %s3 = sld [smem:[#allocation0]]
  $region41: #{tpu_custom_call.1} parent=0
    _
  %s5 = ssub.s32 1, %s3
  %s6 = scalar_select 0, %s5, %s3
  $region1: #{tpu_custom_call.1} parent=0
    #allocation2 [shape = 'u8[4096]{0}', space=vmem, size = 0x1000, scoped, tag = 'output window, operand 0']
    #allocation3 [shape = 's32[2]{0}', space=sflag, size = 0x8, scoped, tag = 'scoped memory for tpu_custom_call.1']
    %7 = vsyncpa [#allocation3], 0
    %s8 = scalar_lea.sflag [#allocation3], 1
    %9 = vsyncpa %s8, 0
    loop: start=0, step=1, limit=4
    $region2: #{tpu_custom_call.1} parent=1 // loop_pre_header
      _
    $region3: #{tpu_custom_call.1} parent=1 // loop_header
      %s11 = sphi 0, %s15
      %p12 = scmp.ge.s32.totalorder %s11, 4
      %s21 = sphi 0, %s23
      %s24 = sphi 0, %s21
      %s25 = sphi 0, %s24
      %s41 = sphi 0, %s25
      %s45 = sphi 0, %s45
      %s47 = sphi 0, %s45
      %s48 = sphi 0, %s47
      %s62 = sphi 0, %s48
      %s68 = sphi 0, %s70
      %s71 = sphi 0, %s68
      %s72 = sphi 0, %s71
      %s88 = sphi 0, %s72
    $region4: #{tpu_custom_call.1} parent=1 // loop_header_branch
      %14 = sbr.rel (%p12) target = $region8
    $region5: #{tpu_custom_call.1} parent=1 // loop_body
      %s16 = ssub.s32 %s11, 1
      %s17 = ssub.s32 %s11, 2
      %s18 = sadd.s32 %s11, 1
      %s19 = ssub.s32 %s11, %s18
      %p20 = scmp.eq.s32.totalorder %s19, 0
      %s22 = sadd.s32 %s21, 1
      %s23 = scalar_select %p20, %s21, %s22
      %p26 = pneg %p20
      %p27 = scmp.eq.s32.totalorder %s11, 1
      %p28 = por %p26, %p27
      %p29 = scmp.ne.s32.totalorder %s21, %s24
      %p30 = scmp.eq.s32.totalorder %s11, 0
      %p31 = por %p29, %p30
      %p32 = scmp.ne.s32.totalorder %s21, %s24
      %p33 = scmp.eq.s32.totalorder %s16, 1
      %p34 = por %p32, %p33
      %p35 = scmp.ne.s32.totalorder %s24, %s25
      %p36 = scmp.eq.s32.totalorder %s16, 0
      %p37 = por %p35, %p36
      %p38 = scmp.ne.s32.totalorder %s24, %s25
      %p39 = scmp.eq.s32.totalorder %s17, 1
      %p40 = por %p38, %p39
      %p42 = scmp.ne.s32.totalorder %s25, %s41
      %p43 = scmp.eq.s32.totalorder %s17, 0
      %p44 = por %p42, %p43
      %s46 = sadd.s32 %s45, 1
      %p49 = scmp.eq.s32.totalorder %s11, 1
      %p50 = scmp.ne.s32.totalorder %s45, %s47
      %p51 = scmp.eq.s32.totalorder %s11, 0
      %p52 = por %p50, %p51
      %p53 = scmp.ne.s32.totalorder %s45, %s47
      %p54 = scmp.eq.s32.totalorder %s16, 1
      %p55 = por %p53, %p54
      %p56 = scmp.ne.s32.totalorder %s47, %s48
      %p57 = scmp.eq.s32.totalorder %s16, 0
      %p58 = por %p56, %p57
      %p59 = scmp.ne.s32.totalorder %s47, %s48
      %p60 = scmp.eq.s32.totalorder %s17, 1
      %p61 = por %p59, %p60
      %p63 = scmp.ne.s32.totalorder %s48, %s62
      %p64 = scmp.eq.s32.totalorder %s17, 0
      %p65 = por %p63, %p64
      %s66 = ssub.s32 %s11, %s18
      %p67 = scmp.eq.s32.totalorder %s66, 0
      %s69 = sadd.s32 %s68, 1
      %s70 = scalar_select %p67, %s68, %s69
      %p73 = pneg %p67
      %p74 = scmp.eq.s32.totalorder %s11, 1
      %p75 = por %p73, %p74
      %p76 = scmp.ne.s32.totalorder %s68, %s71
      %p77 = scmp.eq.s32.totalorder %s11, 0
      %p78 = por %p76, %p77
      %p79 = scmp.ne.s32.totalorder %s68, %s71
      %p80 = scmp.eq.s32.totalorder %s16, 1
      %p81 = por %p79, %p80
      %p82 = scmp.ne.s32.totalorder %s71, %s72
      %p83 = scmp.eq.s32.totalorder %s16, 0
      %p84 = por %p82, %p83
      %p85 = scmp.ne.s32.totalorder %s71, %s72
      %p86 = scmp.eq.s32.totalorder %s17, 1
      %p87 = por %p85, %p86
      %p89 = scmp.ne.s32.totalorder %s72, %s88
      %p90 = scmp.eq.s32.totalorder %s17, 0
      %p91 = por %p89, %p90
      %p92 = scmp.le.s32.totalorder 1, %s11
      %p93 = scmp.lt.s32.totalorder %s11, 3
      %p94 = pnand %p92, %p93
      %p95 = pneg %p94
      // Predicated region
      $region9: #{tpu_custom_call.1} parent=5 // pred_check
        _
      $region10: #{tpu_custom_call.1} parent=5 // pred_check_branch
        %97 = sbr.rel (%p94) target = $region12
      $region11: #{tpu_custom_call.1} parent=5 // pred_region
        %s98 = ssub.s32 %s11, 1
        // Predicated region
        $region13: #{tpu_custom_call.1} parent=11 // pred_check
          %p99 = pneg %p58
        $region14: #{tpu_custom_call.1} parent=11 // pred_check_branch
          %101 = sbr.rel (%p99) target = $region16
        $region15: #{tpu_custom_call.1} parent=11 // pred_region
          _
        $region16: #{tpu_custom_call.1} parent=11 // pred_fallthru
          _
      $region12: #{tpu_custom_call.1} parent=5 // pred_fallthru
        _
      %p102 = scmp.lt.s32.totalorder %s11, 2
      // Predicated region
      $region17: #{tpu_custom_call.1} parent=5 // pred_check
        %p103 = pneg %p102
      $region18: #{tpu_custom_call.1} parent=5 // pred_check_branch
        %105 = sbr.rel (%p103) target = $region20
      $region19: #{tpu_custom_call.1} parent=5 // pred_region
        // Predicated region
        $region21: #{tpu_custom_call.1} parent=19 // pred_check
          %p106 = pneg %p31
        $region22: #{tpu_custom_call.1} parent=19 // pred_check_branch
          %108 = sbr.rel (%p106) target = $region24
        $region23: #{tpu_custom_call.1} parent=19 // pred_region
          %p109 = scmp.lt.s32.totalorder %s11, 1
          %s110 = scalar_select %p109, %s11, 1
          %s111 = smul.addr %s110, 2
          %s112 = smul.addr %s111, 4
          %s113 = scalar_lea.vmem %s0, %s112
        $region24: #{tpu_custom_call.1} parent=19 // pred_fallthru
          _
      $region20: #{tpu_custom_call.1} parent=5 // pred_fallthru
        _
      %p114 = scmp.le.s32.totalorder 1, %s11
      %p115 = scmp.lt.s32.totalorder %s11, 3
      %p116 = pnand %p114, %p115
      %p117 = pneg %p116
      // Predicated region
      $region25: #{tpu_custom_call.1} parent=5 // pred_check
        _
      $region26: #{tpu_custom_call.1} parent=5 // pred_check_branch
        %119 = sbr.rel (%p116) target = $region28
      $region27: #{tpu_custom_call.1} parent=5 // pred_region
        %s120 = ssub.s32 %s11, 1
        %p121 = scmp.lt.s32.totalorder %s16, 1
        %s122 = scalar_select %p121, %s16, 1
        %s123 = smul.addr %s122, 2
        %s124 = smul.addr %s123, 4
        %s125 = scalar_lea.vmem %s0, %s124
        %p126 = pneg %p37
        %p127 = pneg %p34
        %p128 = pneg %p58
        %p129 = pneg %p55
        %p130 = pneg %p84
        %p131 = pneg %p81
        %s132 = sand.u32 %s71, 1
        %s133 = scalar_lea.sflag [#allocation3], %s132
        %s134 = sand.u32 %s71, 1
        %s135 = smul.addr %s134, 4
        %s136 = scalar_lea.vmem [#allocation2], %s135
        %p137 = scmp.lt.s32.totalorder %s16, 1
        %s138 = scalar_select %p137, %s16, 1
        %s139 = smul.addr %s138, 2
        %s140 = smul.addr %s139, 4
        %s141 = scalar_lea.vmem %s0, %s140
        %v142 = vld [vmem:[%s141] sm:$0xff]
        %v143 = vmul.f32 %v142, 1.442695
        %v144 = vpow.pop %v143
        %146 = vst [vmem:[#allocation1] ss:$2 sm:$0xff] %v144
        %v147 = vld.sshfl [vmem:[#allocation1] sm:$0xff pattern:$0x75316420]
        %v148 = vld.sshfl [vmem:[#allocation1 + $0x8] sm:$0xff pattern:$0x75316420]
        %vm151 = vcmask 1043456
        %v152 = vsel %vm151, %v147, 0.0
        %v153 = vrot.slane %v152, 4
        %v154 = vadd.f32 %v152, %v153
        %v155 = vrot.slane %v154, 2
        %v156 = vadd.f32 %v154, %v155
        %v157 = vrot.slane %v156, 1
        %v158 = vadd.f32 %v156, %v157
        %v159 = vsel %vm151, %v148, 0.0
        %v160 = vrot.slane %v159, 4
        %v161 = vadd.f32 %v159, %v160
        %v162 = vrot.slane %v161, 2
        %v163 = vadd.f32 %v161, %v162
        %v164 = vrot.slane %v163, 1
        %v165 = vadd.f32 %v163, %v164
        %v168 = vrot.slane %v165, 4
        %v169 = vsel %vm151, %v158, %v168
        %v171 = vmul.f32 %v142, %v169
        %v172 = vld [vmem:[%s1] sm:$0xff]
        %v173 = vld [vmem:[%s1 + $0x8] sm:$0xff]
        %v174 = vld [vmem:[%s1 + $0x10] sm:$0xff]
        %v175 = vld [vmem:[%s1 + $0x18] sm:$0xff]
        %v176 = vld [vmem:[%s1 + $0x20] sm:$0xff]
        %v177 = vld [vmem:[%s1 + $0x28] sm:$0xff]
        %v178 = vld [vmem:[%s1 + $0x30] sm:$0xff]
        %v179 = vld [vmem:[%s1 + $0x38] sm:$0xff]
        %v180 = vld [vmem:[%s1 + $0x40] sm:$0xff]
        %v181 = vld [vmem:[%s1 + $0x48] sm:$0xff]
        %v182 = vld [vmem:[%s1 + $0x50] sm:$0xff]
        %v183 = vld [vmem:[%s1 + $0x58] sm:$0xff]
        %v184 = vld [vmem:[%s1 + $0x60] sm:$0xff]
        %v185 = vld [vmem:[%s1 + $0x68] sm:$0xff]
        %v186 = vld [vmem:[%s1 + $0x70] sm:$0xff]
        %v187 = vld [vmem:[%s1 + $0x78] sm:$0xff]
        %v188 = vld [vmem:[%s1 + $0x80] sm:$0xff]
        %v189 = vld [vmem:[%s1 + $0x88] sm:$0xff]
        %v190 = vld [vmem:[%s1 + $0x90] sm:$0xff]
        %v191 = vld [vmem:[%s1 + $0x98] sm:$0xff]
        %v192 = vld [vmem:[%s1 + $0xa0] sm:$0xff]
        %v193 = vld [vmem:[%s1 + $0xa8] sm:$0xff]
        %v194 = vld [vmem:[%s1 + $0xb0] sm:$0xff]
        %v195 = vld [vmem:[%s1 + $0xb8] sm:$0xff]
        %v196 = vld [vmem:[%s1 + $0xc0] sm:$0xff]
        %v197 = vld [vmem:[%s1 + $0xc8] sm:$0xff]
        %v198 = vld [vmem:[%s1 + $0xd0] sm:$0xff]
        %v199 = vld [vmem:[%s1 + $0xd8] sm:$0xff]
        %v200 = vld [vmem:[%s1 + $0xe0] sm:$0xff]
        %v201 = vld [vmem:[%s1 + $0xe8] sm:$0xff]
        %v202 = vld [vmem:[%s1 + $0xf0] sm:$0xff]
        %v203 = vld [vmem:[%s1 + $0xf8] sm:$0xff]
        %205 = vst [vmem:[#allocation1] ss:$2 sm:$0xff] %v171
        %v206 = vld.sshfl [vmem:[#allocation1] sm:$0xff pattern:$0x75316420]
        %v207 = vld.sshfl [vmem:[#allocation1 + $0x8] sm:$0xff pattern:$0x75316420]
        %210 = vmatpush.msra.mxu0 %v187
        %211 = vmatpush.msra.mxu0 %v186
        %212 = vmatpush.msra.mxu0 %v185
        %213 = vmatpush.msra.mxu0 %v184
        %214 = vmatpush.msra.mxu0 %v183
        %215 = vmatpush.msra.mxu0 %v182
        %216 = vmatpush.msra.mxu0 %v181
        %217 = vmatpush.msra.mxu0 %v180
        %218 = vmatpush.msra.mxu0 %v179
        %219 = vmatpush.msra.mxu0 %v178
        %220 = vmatpush.msra.mxu0 %v177
        %221 = vmatpush.msra.mxu0 %v176
        %222 = vmatpush.msra.mxu0 %v175
        %223 = vmatpush.msra.mxu0 %v174
        %224 = vmatpush.msra.mxu0 %v173
        %225 = vmatpush.msra.mxu0 %v172
        %226 = vmatmul.f32.gmra.mxu0 %v206
        %v227 = vpop.f32.mrf.mxu0
        %v228 = vadd.f32 0.0, %v227
        %229 = vdwg.mxu0
        %230 = vmatpush.msra.mxu0 %v203
        %231 = vmatpush.msra.mxu0 %v202
        %232 = vmatpush.msra.mxu0 %v201
        %233 = vmatpush.msra.mxu0 %v200
        %234 = vmatpush.msra.mxu0 %v199
        %235 = vmatpush.msra.mxu0 %v198
        %236 = vmatpush.msra.mxu0 %v197
        %237 = vmatpush.msra.mxu0 %v196
        %238 = vmatpush.msra.mxu0 %v195
        %239 = vmatpush.msra.mxu0 %v194
        %240 = vmatpush.msra.mxu0 %v193
        %241 = vmatpush.msra.mxu0 %v192
        %242 = vmatpush.msra.mxu0 %v191
        %243 = vmatpush.msra.mxu0 %v190
        %244 = vmatpush.msra.mxu0 %v189
        %245 = vmatpush.msra.mxu0 %v188
        %246 = vmatmul.f32.gmra.mxu0 %v207
        %v247 = vpop.f32.mrf.mxu0
        %v248 = vadd.f32 %v228, %v247
        %249 = vdwg.mxu0
        %250 = vmatpush.msra.mxu0 %v187
        %251 = vmatpush.msra.mxu0 %v186
        %252 = vmatpush.msra.mxu0 %v185
        %253 = vmatpush.msra.mxu0 %v184
        %254 = vmatpush.msra.mxu0 %v183
        %255 = vmatpush.msra.mxu0 %v182
        %256 = vmatpush.msra.mxu0 %v181
        %257 = vmatpush.msra.mxu0 %v180
        %258 = vmatpush.msra.mxu0 %v179
        %259 = vmatpush.msra.mxu0 %v178
        %260 = vmatpush.msra.mxu0 %v177
        %261 = vmatpush.msra.mxu0 %v176
        %262 = vmatpush.msra.mxu0 %v175
        %263 = vmatpush.msra.mxu0 %v174
        %264 = vmatpush.msra.mxu0 %v173
        %265 = vmatpush.msra.mxu0 %v172
        %266 = vmatmul.f32.gmra.mxu0 %v158
        %v267 = vpop.f32.mrf.mxu0
        %v268 = vadd.f32 0.0, %v267
        %269 = vdwg.mxu0
        %270 = vmatpush.msra.mxu0 %v203
        %271 = vmatpush.msra.mxu0 %v202
        %272 = vmatpush.msra.mxu0 %v201
        %273 = vmatpush.msra.mxu0 %v200
        %274 = vmatpush.msra.mxu0 %v199
        %275 = vmatpush.msra.mxu0 %v198
        %276 = vmatpush.msra.mxu0 %v197
        %277 = vmatpush.msra.mxu0 %v196
        %278 = vmatpush.msra.mxu0 %v195
        %279 = vmatpush.msra.mxu0 %v194
        %280 = vmatpush.msra.mxu0 %v193
        %281 = vmatpush.msra.mxu0 %v192
        %282 = vmatpush.msra.mxu0 %v191
        %283 = vmatpush.msra.mxu0 %v190
        %284 = vmatpush.msra.mxu0 %v189
        %285 = vmatpush.msra.mxu0 %v188
        %286 = vmatmul.f32.gmra.mxu0 %v165
        %v287 = vpop.f32.mrf.mxu0
        %v288 = vadd.f32 %v268, %v287
        %289 = vdwg.mxu0
        %v290 = vrcp.pop %v288
        %v291 = vmul.f32 %v288, %v290
        %v292 = vsub.f32 1.0, %v291
        %v293 = vmul.f32 %v290, %v292
        %v294 = vadd.f32 %v290, %v293
        %vm295 = vweird.f32 %v288
        %vm296 = vweird.f32 %v290
        %vm297 = vmor %vm295, %vm296
        %v298 = vsel %vm297, %v290, %v294
        %v299 = vand.u32 2147483647, %v288
        %vm300 = vcmp.eq.f32.partialorder %v299, 8.507059e+37
        %v301 = vand.u32 %v288, 2147483648
        %v302 = vor.u32 1.1754944e-38, %v301
        %v303 = vsel %vm300, %v302, %v298
        %v304 = vperm.slane %v303, 0
        %v305 = vmul.f32 %v248, %v304
        %vm306 = vcmask 519168
        %307 = vst.msk [vmem:[%s136] sm:$0xf] %vm306, %v305
        %s308 = sand.u32 %s71, 1
        %s309 = scalar_lea.sflag [#allocation3], %s308
        %s310 = sand.u32 %s71, 1
        %s311 = smul.addr %s310, 4
        %s312 = scalar_lea.vmem [#allocation2], %s311
        // Predicated region
        $region29: #{tpu_custom_call.1} parent=27 // pred_check
          %p313 = pneg %p81
        $region30: #{tpu_custom_call.1} parent=27 // pred_check_branch
          %315 = sbr.rel (%p313) target = $region32
        $region31: #{tpu_custom_call.1} parent=27 // pred_region
          %317 = vsyncadd %s309, 0
          %s318 = smul.addr %s16, 4
          %s319 = scalar_lea.hbm %s2, %s318
          %s321 = sshll.u32 %s312, 4
          %s322 = int_to_ptr.vmem [resolvable:$true] %s321
          %s323 = sshll.u32 %s319, 4
          %s324 = int_to_ptr.hbm [resolvable:$true] %s323
          %326 = dma.vmem_to_hbm [thread:$0]  %s322, 64, %s324, %s309
        $region32: #{tpu_custom_call.1} parent=27 // pred_fallthru
          _
      $region28: #{tpu_custom_call.1} parent=5 // pred_fallthru
        _
      %p327 = scmp.le.s32.totalorder 2, %s11
      // Predicated region
      $region33: #{tpu_custom_call.1} parent=5 // pred_check
        %p328 = pneg %p327
      $region34: #{tpu_custom_call.1} parent=5 // pred_check_branch
        %330 = sbr.rel (%p328) target = $region36
      $region35: #{tpu_custom_call.1} parent=5 // pred_region
        %s331 = ssub.s32 %s11, 2
        // Predicated region
        $region37: #{tpu_custom_call.1} parent=35 // pred_check
          %p332 = pneg %p87
        $region38: #{tpu_custom_call.1} parent=35 // pred_check_branch
          %334 = sbr.rel (%p332) target = $region40
        $region39: #{tpu_custom_call.1} parent=35 // pred_region
          %s335 = sand.u32 %s72, 1
          %s336 = scalar_lea.sflag [#allocation3], %s335
          %s337 = sand.u32 %s72, 1
          %s338 = smul.addr %s337, 4
          %s339 = scalar_lea.vmem [#allocation2], %s338
          %341 = dma.done %s336, 64
        $region40: #{tpu_custom_call.1} parent=35 // pred_fallthru
          _
      $region36: #{tpu_custom_call.1} parent=5 // pred_fallthru
        _
    $region6: #{tpu_custom_call.1} parent=1 // loop_footer
      %s15 = sadd.s32 1, %s11
    $region7: #{tpu_custom_call.1} parent=1 // loop_footer_branch
      %10 = sbr.rel target = $region3
    $region8: #{tpu_custom_call.1} parent=1 // loop_exit
      _
    %342 = vsyncpa [#allocation3], 1
    %s343 = scalar_lea.sflag [#allocation3], 1
    %344 = vsyncpa %s343, 1

</llo_original>
